<compile_context>
chip_gen: v6e
topology: v6e:2x2x1
jax: 0.10.0
libtpu: 0.0.40
codegen_flags: <defaults>
</compile_context>

<pallas_src>
import functools

import jax
import jax.numpy as jnp
from jax.experimental import pallas as pl
from jax.experimental.pallas import tpu as pltpu


def _pairwise_l1(m, mt):
    """m: (PB, v, d) f32, mt: (PB, d, v) f32 -> (PB, v, v) f32 L1 distances."""
    _, _, d = m.shape
    # Initialize from k=0 (saves one (PB,v,v) zero-fill + add on the VALU).
    dist = jnp.abs(m[:, :, 0:1] - mt[:, 0:1, :])
    for k in range(1, d):                     # d is tiny (3); unrolled at trace time
        dist = dist + jnp.abs(m[:, :, k:k + 1] - mt[:, k:k + 1, :])
    return dist


def _slab_dims(v):
    """Shape of the per-block partial-sum slab produced by _fold_partial."""
    r = 8 if (v % 8 == 0 and v > 8) else v
    c = 128 if (v % 128 == 0 and v > 128) else v
    return r, c


def _fold_partial(x):
    """(PB, v, v) f32 -> (R, C) partial sums using only tile-aligned VPU adds.

    Leading-dim sums and lane-aligned 128-wide slices keep the epilogue on the
    VALU slot: no per-step (v,v)->scalar XLU tree reduce and no full broadcast.
    The host finishes with a tiny reduction over the (nb, R, C) outputs.
    """
    s = x.sum(axis=0)                                     # (v, v): adds over p slabs
    v = s.shape[0]
    if v % 8 == 0 and v > 8:
        s = s.reshape(v // 8, 8, v).sum(axis=0)           # (8, v): sublane-major fold
    c = s.shape[-1]
    if c % 128 == 0 and c > 128:
        acc = s[:, 0:128]
        for j in range(1, c // 128):                      # lane-aligned slices
            acc = acc + s[:, j * 128:(j + 1) * 128]
        s = acc                                           # (R, 128): lane fold
    return s


def _matching_kernel(*refs, masked, has_tail):
    it = iter(refs)
    match_ref = next(it)
    match_t_ref = next(it)
    viz_ref = next(it) if masked else None
    pv_ref = next(it) if has_tail else None
    num_ref = next(it)
    den_ref = next(it) if masked else None

    m = match_ref[...].astype(jnp.float32)       # (PB, v, d), widened in-kernel
    mt = match_t_ref[...].astype(jnp.float32)    # (PB, d, v)
    dist = _pairwise_l1(m, mt)                   # (PB, v, v)

    if masked:
        vizf = viz_ref[...].astype(jnp.float32)  # bool/int8 -> f32 in-kernel
        num3 = dist * vizf
        den3 = vizf
    else:
        num3 = dist
        den3 = None

    if has_tail:
        # Zero contributions of p-slices past the true extent (partial last block).
        pv = pv_ref[...] > jnp.float32(0.5)      # (PB, 1, 1) bool
        num3 = jnp.where(pv, num3, 0.0)
        if masked:
            den3 = jnp.where(pv, den3, 0.0)

    num_ref[...] = _fold_partial(num3)[None]
    if masked:
        den_ref[...] = _fold_partial(den3)[None]


def _padded_tile_bytes(rows, cols, itemsize):
    """VMEM footprint of a (rows, cols) slab after (sublane, lane) tile padding."""
    sublane = 8 * max(1, 4 // itemsize)          # 8 for f32, 16 for bf16, 32 for int8/bool
    r = -(-rows // sublane) * sublane
    c = -(-cols // 128) * 128
    return r * c * itemsize


def _vmem_plan():
    """Generation-aware (vmem_limit_bytes, block-chooser budget)."""
    cap = None
    try:
        cap = getattr(pltpu.get_tpu_info(), "vmem_capacity_bytes", None)
    except Exception:
        cap = None
    if cap is None:
        cap = 64 * 1024 * 1024                     # assume the smallest (v7x-sized) VMEM
    if cap >= 96 * 1024 * 1024:                    # v5e / v6e: 128 MiB physical
        return 64 * 1024 * 1024, 28 * 1024 * 1024
    return 32 * 1024 * 1024, 18 * 1024 * 1024      # v7x: 64 MiB physical, stay conservative


def _choose_block_p(p, v, d, masked, match_itemsize, vmem_budget):
    """Largest block of p slices whose per-step VMEM footprint fits the budget."""
    per_p = 2 * (_padded_tile_bytes(v, d, match_itemsize)
                 + _padded_tile_bytes(d, v, match_itemsize))    # double-buffered inputs
    per_p += (_padded_tile_bytes(v, d, 4)
              + _padded_tile_bytes(d, v, 4))                    # f32-widened match
    n_vv_f32 = 5 if masked else 3        # dist, widened viz, product, broadcast temps
    per_p += n_vv_f32 * _padded_tile_bytes(v, v, 4)
    if masked:
        per_p += 2 * _padded_tile_bytes(v, v, 1)                # double-buffered viz
    fixed = 4 * _padded_tile_bytes(8, 128, 4)                   # double-buffered outputs
    return max(1, min(p, (vmem_budget - fixed) // per_p))


def matching_loss(match, viz_mtx=None, block_p=None):
    """match: (p, v, d) float; viz_mtx: (p, v, v) bool/int8 or None. Scalar f32 loss."""
    p, v, d = match.shape
    # Keep match in its native dtype; the f32 widen happens inside the kernel.
    match_t = jnp.transpose(match, (0, 2, 1))                   # (p, d, v), small glue copy

    masked = viz_mtx is not None
    viz = None
    if masked:
        vdt = viz_mtx.dtype
        if vdt == jnp.bool_ or vdt == jnp.int8 or vdt == jnp.uint8:
            viz = viz_mtx                 # stream the 1-byte buffer directly, no host cast
        else:
            viz = viz_mtx.astype(jnp.int8)

    vmem_limit, vmem_budget = _vmem_plan()
    isz = jnp.dtype(match.dtype).itemsize
    if block_p is None:
        cap_vmem = _choose_block_p(p, v, d, masked, isz, vmem_budget)
        # Keep >= ~8 grid steps: >=2 per TensorCore for v7x megacore sharding and
        # enough steps for input-DMA / compute double-buffering overlap.
        cap_steps = max(1, pl.cdiv(p, 8))
        block_p = max(1, min(cap_vmem, cap_steps))
    block_p = min(block_p, p)
    nb = pl.cdiv(p, block_p)
    has_tail = (nb * block_p) != p

    r, c = _slab_dims(v)
    part_shape = jax.ShapeDtypeStruct((nb, r, c), jnp.float32)
    out_block = pl.BlockSpec((1, r, c), lambda i: (i, 0, 0))

    in_specs = [
        pl.BlockSpec((block_p, v, d), lambda i: (i, 0, 0)),
        pl.BlockSpec((block_p, d, v), lambda i: (i, 0, 0)),
    ]
    operands = [match, match_t]
    if masked:
        in_specs.append(pl.BlockSpec((block_p, v, v), lambda i: (i, 0, 0)))
        operands.append(viz)
    if has_tail:
        pvalid = (jnp.arange(nb * block_p) < p).astype(jnp.float32)
        pvalid = pvalid.reshape(nb * block_p, 1, 1)             # tiny per-p validity input
        in_specs.append(pl.BlockSpec((block_p, 1, 1), lambda i: (i, 0, 0)))
        operands.append(pvalid)

    params = pltpu.CompilerParams(
        dimension_semantics=("parallel",),
        vmem_limit_bytes=vmem_limit,
    )
    kernel = functools.partial(_matching_kernel, masked=masked, has_tail=has_tail)

    if masked:
        cost = pl.CostEstimate(
            flops=p * v * v * (3 * d + 4), transcendentals=0,
            bytes_accessed=2 * p * v * d * isz + p * v * v + 2 * nb * r * c * 4)
        num_p, den_p = pl.pallas_call(
            kernel,
            out_shape=(part_shape, part_shape),
            grid_spec=pltpu.PrefetchScalarGridSpec(
                num_scalar_prefetch=0, grid=(nb,),
                in_specs=in_specs, out_specs=[out_block, out_block]),
            compiler_params=params,
            cost_estimate=cost,
        )(*operands)
        # NOTE: an all-false viz mask gives 0/0 = NaN, matching the PyTorch module.
        return num_p.sum() / den_p.sum()

    cost = pl.CostEstimate(
        flops=p * v * v * (3 * d + 1), transcendentals=0,
        bytes_accessed=2 * p * v * d * isz + nb * r * c * 4)
    num_p = pl.pallas_call(
        kernel,
        out_shape=part_shape,
        grid_spec=pltpu.PrefetchScalarGridSpec(
            num_scalar_prefetch=0, grid=(nb,),
            in_specs=in_specs, out_specs=out_block),
        compiler_params=params,
        cost_estimate=cost,
    )(*operands)
    return num_p.sum() / (p * v * v)


def _reference(match, viz_mtx=None):
    # pure-JAX reference mirroring the PyTorch forward
    diff = jnp.abs(match[:, None, :, :] - match[:, :, None, :]).sum(-1)  # (p, v, v)
    if viz_mtx is not None:
        m = viz_mtx.astype(jnp.float32)
        return (diff * m).sum() / m.sum()
    return diff.mean()


if __name__ == "__main__":
    key = jax.random.PRNGKey(0)
    k1, k2, k3, k4, k5, k6 = jax.random.split(key, 6)

    # Small demo shapes consistent with the module: (p, v, 3) candidate matches.
    p, v, d = 8, 8, 3
    match = jax.random.normal(k1, (p, v, d), dtype=jnp.float32)
    viz_mtx = jax.random.bernoulli(k2, 0.6, (p, v, v))          # bool, streamed directly
    viz_mtx = viz_mtx.at[0, 0, 0].set(True)                     # nonzero denominator

    ref = _reference(match, viz_mtx)

    # masked path, default block choice
    loss = matching_loss(match, viz_mtx)
    jax.block_until_ready(loss)
    assert jnp.allclose(loss, ref, rtol=1e-5, atol=1e-5), (loss, ref)

    # masked path, multiple p-slices per grid step (block_p divides p)
    loss_mb = matching_loss(match, viz_mtx, block_p=2)
    jax.block_until_ready(loss_mb)
    assert jnp.allclose(loss_mb, ref, rtol=1e-5, atol=1e-5), (loss_mb, ref)

    # masked path, block_p that does NOT divide p (exercises the tail guard)
    loss_tail = matching_loss(match, viz_mtx, block_p=3)
    jax.block_until_ready(loss_tail)
    assert jnp.allclose(loss_tail, ref, rtol=1e-5, atol=1e-5), (loss_tail, ref)

    # no-mask path (plain mean; no viz stream at all)
    loss_nm = matching_loss(match, None)
    jax.block_until_ready(loss_nm)
    ref_nm = _reference(match, None)
    assert jnp.allclose(loss_nm, ref_nm, rtol=1e-5, atol=1e-5), (loss_nm, ref_nm)

    # larger v exercising the in-kernel sublane fold (v % 8 == 0, v > 8)
    p2, v2 = 4, 128
    match2 = jax.random.normal(k3, (p2, v2, d), dtype=jnp.float32)
    viz2 = jax.random.bernoulli(k4, 0.5, (p2, v2, v2))
    viz2 = viz2.at[0, 0, 0].set(True)
    loss2 = matching_loss(match2, viz2)
    jax.block_until_ready(loss2)
    ref2 = _reference(match2, viz2)
    assert jnp.allclose(loss2, ref2, rtol=5e-4, atol=5e-4), (loss2, ref2)

    # larger v exercising the lane fold as well (v % 128 == 0, v > 128)
    p3, v3 = 2, 256
    match3 = jax.random.normal(k5, (p3, v3, d), dtype=jnp.float32)
    viz3 = jax.random.bernoulli(k6, 0.5, (p3, v3, v3))
    viz3 = viz3.at[0, 0, 0].set(True)
    loss3 = matching_loss(match3, viz3)
    jax.block_until_ready(loss3)
    ref3 = _reference(match3, viz3)
    assert jnp.allclose(loss3, ref3, rtol=5e-4, atol=5e-4), (loss3, ref3)

    print("KERNEL_OK")
</pallas_src>

<mosaic_0001>
module attributes {stable_mosaic.version = 11 : i64} {
  func.func @_matching_kernel(%arg0: i32, %arg1: memref<1x8x3xf32, #tpu.memory_space<vmem>>, %arg2: memref<1x3x8xf32, #tpu.memory_space<vmem>>, %arg3: memref<1x8x8xi32, #tpu.memory_space<vmem>>, %arg4: memref<1x8x8xf32, #tpu.memory_space<vmem>>, %arg5: memref<1x8x8xf32, #tpu.memory_space<vmem>>) attributes {dimension_semantics = [#tpu.dimension_semantics<parallel>], iteration_bounds = array<i64: 8>, scalar_prefetch = 0 : i64, scratch_operands = 0 : i64, tpu.core_type = #tpu.core_type<tc>, window_params = [{transform_indices = @transform_0, window_bounds = array<i64: 1, 8, 3>}, {transform_indices = @transform_1, window_bounds = array<i64: 1, 3, 8>}, {transform_indices = @transform_2, window_bounds = array<i64: 1, 8, 8>}, {transform_indices = @transform_3, window_bounds = array<i64: 1, 8, 8>}, {transform_indices = @transform_4, window_bounds = array<i64: 1, 8, 8>}]} {
    %c0 = arith.constant 0 : index
    %c0_0 = arith.constant 0 : index
    %c0_1 = arith.constant 0 : index
    %0 = vector.load %arg1[%c0, %c0_0, %c0_1] : memref<1x8x3xf32, #tpu.memory_space<vmem>>, vector<1x8x3xf32>
    %c0_2 = arith.constant 0 : index
    %c0_3 = arith.constant 0 : index
    %c0_4 = arith.constant 0 : index
    %1 = vector.load %arg2[%c0_2, %c0_3, %c0_4] : memref<1x3x8xf32, #tpu.memory_space<vmem>>, vector<1x3x8xf32>
    %2 = vector.extract_strided_slice %0 {offsets = [0, 0, 0], sizes = [1, 8, 1], strides = [1, 1, 1]} : vector<1x8x3xf32> to vector<1x8x1xf32>
    %3 = vector.extract_strided_slice %1 {offsets = [0, 0, 0], sizes = [1, 1, 8], strides = [1, 1, 1]} : vector<1x3x8xf32> to vector<1x1x8xf32>
    %4 = vector.broadcast %2 : vector<1x8x1xf32> to vector<1x8x8xf32>
    %5 = vector.broadcast %3 : vector<1x1x8xf32> to vector<1x8x8xf32>
    %6 = arith.subf %4, %5 : vector<1x8x8xf32>
    %7 = math.absf %6 : vector<1x8x8xf32>
    %8 = vector.extract_strided_slice %0 {offsets = [0, 0, 1], sizes = [1, 8, 1], strides = [1, 1, 1]} : vector<1x8x3xf32> to vector<1x8x1xf32>
    %9 = vector.extract_strided_slice %1 {offsets = [0, 1, 0], sizes = [1, 1, 8], strides = [1, 1, 1]} : vector<1x3x8xf32> to vector<1x1x8xf32>
    %10 = vector.broadcast %8 : vector<1x8x1xf32> to vector<1x8x8xf32>
    %11 = vector.broadcast %9 : vector<1x1x8xf32> to vector<1x8x8xf32>
    %12 = arith.subf %10, %11 : vector<1x8x8xf32>
    %13 = math.absf %12 : vector<1x8x8xf32>
    %14 = arith.addf %7, %13 : vector<1x8x8xf32>
    %15 = vector.extract_strided_slice %0 {offsets = [0, 0, 2], sizes = [1, 8, 1], strides = [1, 1, 1]} : vector<1x8x3xf32> to vector<1x8x1xf32>
    %16 = vector.extract_strided_slice %1 {offsets = [0, 2, 0], sizes = [1, 1, 8], strides = [1, 1, 1]} : vector<1x3x8xf32> to vector<1x1x8xf32>
    %17 = vector.broadcast %15 : vector<1x8x1xf32> to vector<1x8x8xf32>
    %18 = vector.broadcast %16 : vector<1x1x8xf32> to vector<1x8x8xf32>
    %19 = arith.subf %17, %18 : vector<1x8x8xf32>
    %20 = math.absf %19 : vector<1x8x8xf32>
    %21 = arith.addf %14, %20 : vector<1x8x8xf32>
    %c0_5 = arith.constant 0 : index
    %c0_6 = arith.constant 0 : index
    %c0_7 = arith.constant 0 : index
    %22 = vector.load %arg3[%c0_5, %c0_6, %c0_7] : memref<1x8x8xi32, #tpu.memory_space<vmem>>, vector<1x8x8xi32>
    %cst = arith.constant dense<0> : vector<1x8x8xi32>
    %23 = arith.cmpi ne, %22, %cst : vector<1x8x8xi32>
    %24 = arith.extui %23 : vector<1x8x8xi1> to vector<1x8x8xi32>
    %25 = arith.sitofp %24 : vector<1x8x8xi32> to vector<1x8x8xf32>
    %26 = arith.mulf %21, %25 : vector<1x8x8xf32>
    %cst_8 = arith.constant dense<0.000000e+00> : vector<8x8xf32>
    %27 = vector.multi_reduction <add>, %26, %cst_8 [0] : vector<1x8x8xf32> to vector<8x8xf32>
    %28 = vector.shape_cast %27 : vector<8x8xf32> to vector<1x8x8xf32>
    %c0_9 = arith.constant 0 : index
    %c0_10 = arith.constant 0 : index
    %c0_11 = arith.constant 0 : index
    %29 = vector.load %arg4[%c0_9, %c0_10, %c0_11] : memref<1x8x8xf32, #tpu.memory_space<vmem>>, vector<1x8x8xf32>
    tpu.vector_store %arg4[%c0_9, %c0_10, %c0_11], %28 {strides = array<i32>} : memref<1x8x8xf32, #tpu.memory_space<vmem>>, vector<1x8x8xf32>,
    %cst_12 = arith.constant dense<0.000000e+00> : vector<8x8xf32>
    %30 = vector.multi_reduction <add>, %25, %cst_12 [0] : vector<1x8x8xf32> to vector<8x8xf32>
    %31 = vector.shape_cast %30 : vector<8x8xf32> to vector<1x8x8xf32>
    %c0_13 = arith.constant 0 : index
    %c0_14 = arith.constant 0 : index
    %c0_15 = arith.constant 0 : index
    %32 = vector.load %arg5[%c0_13, %c0_14, %c0_15] : memref<1x8x8xf32, #tpu.memory_space<vmem>>, vector<1x8x8xf32>
    tpu.vector_store %arg5[%c0_13, %c0_14, %c0_15], %31 {strides = array<i32>} : memref<1x8x8xf32, #tpu.memory_space<vmem>>, vector<1x8x8xf32>,
    return
  }
  func.func @transform_0(%arg0: i32) -> (i32, i32, i32) {
    %c0_i32 = arith.constant 0 : i32
    %c0_i32_0 = arith.constant 0 : i32
    %c0_i32_1 = arith.constant 0 : i32
    return %arg0, %c0_i32, %c0_i32_0 : i32, i32, i32
  }
  func.func @transform_1(%arg0: i32) -> (i32, i32, i32) {
    %c0_i32 = arith.constant 0 : i32
    %c0_i32_0 = arith.constant 0 : i32
    %c0_i32_1 = arith.constant 0 : i32
    return %arg0, %c0_i32, %c0_i32_0 : i32, i32, i32
  }
  func.func @transform_2(%arg0: i32) -> (i32, i32, i32) {
    %c0_i32 = arith.constant 0 : i32
    %c0_i32_0 = arith.constant 0 : i32
    %c0_i32_1 = arith.constant 0 : i32
    return %arg0, %c0_i32, %c0_i32_0 : i32, i32, i32
  }
  func.func @transform_3(%arg0: i32) -> (i32, i32, i32) {
    %c0_i32 = arith.constant 0 : i32
    %c0_i32_0 = arith.constant 0 : i32
    %c0_i32_1 = arith.constant 0 : i32
    return %arg0, %c0_i32, %c0_i32_0 : i32, i32, i32
  }
  func.func @transform_4(%arg0: i32) -> (i32, i32, i32) {
    %c0_i32 = arith.constant 0 : i32
    %c0_i32_0 = arith.constant 0 : i32
    %c0_i32_1 = arith.constant 0 : i32
    return %arg0, %c0_i32, %c0_i32_0 : i32, i32, i32
  }
}

</mosaic_0001>

<llo_original>
// kernel: tpu_custom_call.1
$region0: #{tpu_custom_call.1}
  #allocation0 [shape = 'u32[]', space=smem, size = 0x4, offset = 0x4, fixed_abs, tag = 'smem constant byte address 0x4 - core index']
  #allocation1 [shape = 'u32[144,128]{1,0:T(1,128)}', space=vmem, size = 0x12000, scoped, tag = 'internal scratch']
  %s0 = inlined_call_operand.vmem [shape: f32[8,8,3], index: 0, kind: input, shape index: {}]
  %s1 = inlined_call_operand.vmem [shape: f32[8,3,8], index: 1, kind: input, shape index: {}]
  %s2 = inlined_call_operand.vmem [shape: s32[8,8,8], index: 2, kind: input, shape index: {}]
  %s3 = inlined_call_operand.hbm [shape: f32[8,8,8], index: 3, kind: output, shape index: {0}]
  %s4 = inlined_call_operand.hbm [shape: f32[8,8,8], index: 4, kind: output, shape index: {1}]
  %5 = xla_tuple %s3, %s4
  %s6 = sld [smem:[#allocation0]]
  $region53: #{tpu_custom_call.1} parent=0
    _
  %s8 = ssub.s32 1, %s6
  %s9 = scalar_select 0, %s8, %s6
  $region1: #{tpu_custom_call.1} parent=0
    #allocation2 [shape = 'u8[8192]{0}', space=vmem, size = 0x2000, scoped, tag = 'output window, operand 0']
    #allocation3 [shape = 's32[2]{0}', space=sflag, size = 0x8, scoped, tag = 'scoped memory for tpu_custom_call.1']
    #allocation4 [shape = 'u8[8192]{0}', space=vmem, size = 0x2000, scoped, tag = 'output window, operand 1']
    #allocation5 [shape = 's32[2]{0}', space=sflag, size = 0x8, scoped, tag = 'scoped memory for tpu_custom_call.1']
    %10 = vsyncpa [#allocation3], 0
    %s11 = scalar_lea.sflag [#allocation3], 1
    %12 = vsyncpa %s11, 0
    %13 = vsyncpa [#allocation5], 0
    %s14 = scalar_lea.sflag [#allocation5], 1
    %15 = vsyncpa %s14, 0
    loop: start=0, step=1, limit=10
    $region2: #{tpu_custom_call.1} parent=1 // loop_pre_header
      _
    $region3: #{tpu_custom_call.1} parent=1 // loop_header
      %s17 = sphi 0, %s21
      %p18 = scmp.ge.s32.totalorder %s17, 10
      %s27 = sphi 0, %s29
      %s30 = sphi 0, %s27
      %s31 = sphi 0, %s30
      %s47 = sphi 0, %s31
      %s53 = sphi 0, %s55
      %s56 = sphi 0, %s53
      %s57 = sphi 0, %s56
      %s73 = sphi 0, %s57
      %s79 = sphi 0, %s81
      %s82 = sphi 0, %s79
      %s83 = sphi 0, %s82
      %s99 = sphi 0, %s83
      %s105 = sphi 0, %s107
      %s108 = sphi 0, %s105
      %s109 = sphi 0, %s108
      %s125 = sphi 0, %s109
      %s131 = sphi 0, %s133
      %s134 = sphi 0, %s131
      %s135 = sphi 0, %s134
      %s151 = sphi 0, %s135
    $region4: #{tpu_custom_call.1} parent=1 // loop_header_branch
      %20 = sbr.rel (%p18) target = $region8
    $region5: #{tpu_custom_call.1} parent=1 // loop_body
      %s22 = ssub.s32 %s17, 1
      %s23 = ssub.s32 %s17, 2
      %s24 = sadd.s32 %s17, 1
      %s25 = ssub.s32 %s17, %s24
      %p26 = scmp.eq.s32.totalorder %s25, 0
      %s28 = sadd.s32 %s27, 1
      %s29 = scalar_select %p26, %s27, %s28
      %p32 = pneg %p26
      %p33 = scmp.eq.s32.totalorder %s17, 7
      %p34 = por %p32, %p33
      %p35 = scmp.ne.s32.totalorder %s27, %s30
      %p36 = scmp.eq.s32.totalorder %s17, 0
      %p37 = por %p35, %p36
      %p38 = scmp.ne.s32.totalorder %s27, %s30
      %p39 = scmp.eq.s32.totalorder %s22, 7
      %p40 = por %p38, %p39
      %p41 = scmp.ne.s32.totalorder %s30, %s31
      %p42 = scmp.eq.s32.totalorder %s22, 0
      %p43 = por %p41, %p42
      %p44 = scmp.ne.s32.totalorder %s30, %s31
      %p45 = scmp.eq.s32.totalorder %s23, 7
      %p46 = por %p44, %p45
      %p48 = scmp.ne.s32.totalorder %s31, %s47
      %p49 = scmp.eq.s32.totalorder %s23, 0
      %p50 = por %p48, %p49
      %s51 = ssub.s32 %s17, %s24
      %p52 = scmp.eq.s32.totalorder %s51, 0
      %s54 = sadd.s32 %s53, 1
      %s55 = scalar_select %p52, %s53, %s54
      %p58 = pneg %p52
      %p59 = scmp.eq.s32.totalorder %s17, 7
      %p60 = por %p58, %p59
      %p61 = scmp.ne.s32.totalorder %s53, %s56
      %p62 = scmp.eq.s32.totalorder %s17, 0
      %p63 = por %p61, %p62
      %p64 = scmp.ne.s32.totalorder %s53, %s56
      %p65 = scmp.eq.s32.totalorder %s22, 7
      %p66 = por %p64, %p65
      %p67 = scmp.ne.s32.totalorder %s56, %s57
      %p68 = scmp.eq.s32.totalorder %s22, 0
      %p69 = por %p67, %p68
      %p70 = scmp.ne.s32.totalorder %s56, %s57
      %p71 = scmp.eq.s32.totalorder %s23, 7
      %p72 = por %p70, %p71
      %p74 = scmp.ne.s32.totalorder %s57, %s73
      %p75 = scmp.eq.s32.totalorder %s23, 0
      %p76 = por %p74, %p75
      %s77 = ssub.s32 %s17, %s24
      %p78 = scmp.eq.s32.totalorder %s77, 0
      %s80 = sadd.s32 %s79, 1
      %s81 = scalar_select %p78, %s79, %s80
      %p84 = pneg %p78
      %p85 = scmp.eq.s32.totalorder %s17, 7
      %p86 = por %p84, %p85
      %p87 = scmp.ne.s32.totalorder %s79, %s82
      %p88 = scmp.eq.s32.totalorder %s17, 0
      %p89 = por %p87, %p88
      %p90 = scmp.ne.s32.totalorder %s79, %s82
      %p91 = scmp.eq.s32.totalorder %s22, 7
      %p92 = por %p90, %p91
      %p93 = scmp.ne.s32.totalorder %s82, %s83
      %p94 = scmp.eq.s32.totalorder %s22, 0
      %p95 = por %p93, %p94
      %p96 = scmp.ne.s32.totalorder %s82, %s83
      %p97 = scmp.eq.s32.totalorder %s23, 7
      %p98 = por %p96, %p97
      %p100 = scmp.ne.s32.totalorder %s83, %s99
      %p101 = scmp.eq.s32.totalorder %s23, 0
      %p102 = por %p100, %p101
      %s103 = ssub.s32 %s17, %s24
      %p104 = scmp.eq.s32.totalorder %s103, 0
      %s106 = sadd.s32 %s105, 1
      %s107 = scalar_select %p104, %s105, %s106
      %p110 = pneg %p104
      %p111 = scmp.eq.s32.totalorder %s17, 7
      %p112 = por %p110, %p111
      %p113 = scmp.ne.s32.totalorder %s105, %s108
      %p114 = scmp.eq.s32.totalorder %s17, 0
      %p115 = por %p113, %p114
      %p116 = scmp.ne.s32.totalorder %s105, %s108
      %p117 = scmp.eq.s32.totalorder %s22, 7
      %p118 = por %p116, %p117
      %p119 = scmp.ne.s32.totalorder %s108, %s109
      %p120 = scmp.eq.s32.totalorder %s22, 0
      %p121 = por %p119, %p120
      %p122 = scmp.ne.s32.totalorder %s108, %s109
      %p123 = scmp.eq.s32.totalorder %s23, 7
      %p124 = por %p122, %p123
      %p126 = scmp.ne.s32.totalorder %s109, %s125
      %p127 = scmp.eq.s32.totalorder %s23, 0
      %p128 = por %p126, %p127
      %s129 = ssub.s32 %s17, %s24
      %p130 = scmp.eq.s32.totalorder %s129, 0
      %s132 = sadd.s32 %s131, 1
      %s133 = scalar_select %p130, %s131, %s132
      %p136 = pneg %p130
      %p137 = scmp.eq.s32.totalorder %s17, 7
      %p138 = por %p136, %p137
      %p139 = scmp.ne.s32.totalorder %s131, %s134
      %p140 = scmp.eq.s32.totalorder %s17, 0
      %p141 = por %p139, %p140
      %p142 = scmp.ne.s32.totalorder %s131, %s134
      %p143 = scmp.eq.s32.totalorder %s22, 7
      %p144 = por %p142, %p143
      %p145 = scmp.ne.s32.totalorder %s134, %s135
      %p146 = scmp.eq.s32.totalorder %s22, 0
      %p147 = por %p145, %p146
      %p148 = scmp.ne.s32.totalorder %s134, %s135
      %p149 = scmp.eq.s32.totalorder %s23, 7
      %p150 = por %p148, %p149
      %p152 = scmp.ne.s32.totalorder %s135, %s151
      %p153 = scmp.eq.s32.totalorder %s23, 0
      %p154 = por %p152, %p153
      %p155 = scmp.le.s32.totalorder 1, %s17
      %p156 = scmp.lt.s32.totalorder %s17, 9
      %p157 = pnand %p155, %p156
      %p158 = pneg %p157
      // Predicated region
      $region9: #{tpu_custom_call.1} parent=5 // pred_check
        _
      $region10: #{tpu_custom_call.1} parent=5 // pred_check_branch
        %160 = sbr.rel (%p157) target = $region12
      $region11: #{tpu_custom_call.1} parent=5 // pred_region
        %s161 = ssub.s32 %s17, 1
      $region12: #{tpu_custom_call.1} parent=5 // pred_fallthru
        _
      %p162 = scmp.lt.s32.totalorder %s17, 8
      // Predicated region
      $region13: #{tpu_custom_call.1} parent=5 // pred_check
        %p163 = pneg %p162
      $region14: #{tpu_custom_call.1} parent=5 // pred_check_branch
        %165 = sbr.rel (%p163) target = $region16
      $region15: #{tpu_custom_call.1} parent=5 // pred_region
        // Predicated region
        $region17: #{tpu_custom_call.1} parent=15 // pred_check
          %p166 = pneg %p37
        $region18: #{tpu_custom_call.1} parent=15 // pred_check_branch
          %168 = sbr.rel (%p166) target = $region20
        $region19: #{tpu_custom_call.1} parent=15 // pred_region
          %p169 = scmp.lt.s32.totalorder %s17, 7
          %s170 = scalar_select %p169, %s17, 7
          %s171 = smul.addr %s170, 8
          %s172 = scalar_lea.vmem %s0, %s171
        $region20: #{tpu_custom_call.1} parent=15 // pred_fallthru
          _
        // Predicated region
        $region21: #{tpu_custom_call.1} parent=15 // pred_check
          %p173 = pneg %p63
        $region22: #{tpu_custom_call.1} parent=15 // pred_check_branch
          %175 = sbr.rel (%p173) target = $region24
        $region23: #{tpu_custom_call.1} parent=15 // pred_region
          %p176 = scmp.lt.s32.totalorder %s17, 7
          %s177 = scalar_select %p176, %s17, 7
          %s178 = smul.addr %s177, 4
          %s179 = scalar_lea.vmem %s1, %s178
        $region24: #{tpu_custom_call.1} parent=15 // pred_fallthru
          _
        // Predicated region
        $region25: #{tpu_custom_call.1} parent=15 // pred_check
          %p180 = pneg %p89
        $region26: #{tpu_custom_call.1} parent=15 // pred_check_branch
          %182 = sbr.rel (%p180) target = $region28
        $region27: #{tpu_custom_call.1} parent=15 // pred_region
          %p183 = scmp.lt.s32.totalorder %s17, 7
          %s184 = scalar_select %p183, %s17, 7
          %s185 = smul.addr %s184, 8
          %s186 = scalar_lea.vmem %s2, %s185
        $region28: #{tpu_custom_call.1} parent=15 // pred_fallthru
          _
      $region16: #{tpu_custom_call.1} parent=5 // pred_fallthru
        _
      %p187 = scmp.le.s32.totalorder 1, %s17
      %p188 = scmp.lt.s32.totalorder %s17, 9
      %p189 = pnand %p187, %p188
      %p190 = pneg %p189
      // Predicated region
      $region29: #{tpu_custom_call.1} parent=5 // pred_check
        _
      $region30: #{tpu_custom_call.1} parent=5 // pred_check_branch
        %192 = sbr.rel (%p189) target = $region32
      $region31: #{tpu_custom_call.1} parent=5 // pred_region
        %s193 = ssub.s32 %s17, 1
        %p194 = scmp.lt.s32.totalorder %s22, 7
        %s195 = scalar_select %p194, %s22, 7
        %s196 = smul.addr %s195, 8
        %s197 = scalar_lea.vmem %s0, %s196
        %p198 = pneg %p43
        %p199 = pneg %p40
        %p200 = scmp.lt.s32.totalorder %s22, 7
        %s201 = scalar_select %p200, %s22, 7
        %s202 = smul.addr %s201, 4
        %s203 = scalar_lea.vmem %s1, %s202
        %p204 = pneg %p69
        %p205 = pneg %p66
        %p206 = scmp.lt.s32.totalorder %s22, 7
        %s207 = scalar_select %p206, %s22, 7
        %s208 = smul.addr %s207, 8
        %s209 = scalar_lea.vmem %s2, %s208
        %p210 = pneg %p95
        %p211 = pneg %p92
        %p212 = pneg %p121
        %p213 = pneg %p118
        %s214 = sand.u32 %s108, 1
        %s215 = scalar_lea.sflag [#allocation3], %s214
        %s216 = sand.u32 %s108, 1
        %s217 = smul.addr %s216, 8
        %s218 = scalar_lea.vmem [#allocation2], %s217
        %p219 = pneg %p147
        %p220 = pneg %p144
        %s221 = sand.u32 %s134, 1
        %s222 = scalar_lea.sflag [#allocation5], %s221
        %s223 = sand.u32 %s134, 1
        %s224 = smul.addr %s223, 8
        %s225 = scalar_lea.vmem [#allocation4], %s224
        %p226 = scmp.lt.s32.totalorder %s22, 7
        %s227 = scalar_select %p226, %s22, 7
        %s228 = smul.addr %s227, 8
        %s229 = scalar_lea.vmem %s0, %s228
        %p230 = scmp.lt.s32.totalorder %s22, 7
        %s231 = scalar_select %p230, %s22, 7
        %s232 = smul.addr %s231, 4
        %s233 = scalar_lea.vmem %s1, %s232
        %p234 = scmp.lt.s32.totalorder %s22, 7
        %s235 = scalar_select %p234, %s22, 7
        %s236 = smul.addr %s235, 8
        %s237 = scalar_lea.vmem %s2, %s236
        %v238 = vld [vmem:[%s229] sm:$0xff]
        %v239 = vld [vmem:[%s233] sm:$0x7]
        %241 = vset.pattern.permute.xlu0 0
        %242 = vperm.xlu0 %241, %v238
        %v243 = vpop.permute.xlu0 %242
        %v245 = vlaneseq
        %v246 = vshrl.u32 %v245, 7
        %v247 = vsub.s32 0, %v246
        %v248 = vrot.slane %v239, %v247
        %v249 = vsub.f32 %v243, %v248
        %v250 = vand.u32 2147483647, %v249
        %251 = vset.pattern.permute.xlu0 1
        %252 = vperm.xlu0 %251, %v238
        %v253 = vpop.permute.xlu0 %252
        %v255 = vlaneseq
        %v256 = vshrl.u32 %v255, 7
        %v257 = vsub.s32 1, %v256
        %v258 = vrot.slane %v239, %v257
        %v259 = vsub.f32 %v253, %v258
        %v260 = vand.u32 2147483647, %v259
        %v261 = vadd.f32 %v250, %v260
        %262 = vset.pattern.permute.xlu0 2
        %263 = vperm.xlu0 %262, %v238
        %v264 = vpop.permute.xlu0 %263
        %v266 = vlaneseq
        %v267 = vshrl.u32 %v266, 7
        %v268 = vsub.s32 2, %v267
        %v269 = vrot.slane %v239, %v268
        %v270 = vsub.f32 %v264, %v269
        %v271 = vand.u32 2147483647, %v270
        %v272 = vadd.f32 %v261, %v271
        %v273 = vld [vmem:[%s237] sm:$0xff]
        %vm274 = vcmp.ne.s32.totalorder %v273, 0
        %v275 = vsel %vm274, 1, 0
        %v276 = vcvt.s32.f32 %v275
        %v277 = vmul.f32 %v272, %v276
        %v278 = vadd.f32 %v277, 0.0
        %vm279 = vcmask 64512
        %280 = vst.msk [vmem:[%s218] sm:$0xff] %vm279, %v278
        %v281 = vadd.f32 %v276, 0.0
        %282 = vst.msk [vmem:[%s225] sm:$0xff] %vm279, %v281
        %s283 = sand.u32 %s108, 1
        %s284 = scalar_lea.sflag [#allocation3], %s283
        %s285 = sand.u32 %s108, 1
        %s286 = smul.addr %s285, 8
        %s287 = scalar_lea.vmem [#allocation2], %s286
        %s288 = sand.u32 %s134, 1
        %s289 = scalar_lea.sflag [#allocation5], %s288
        %s290 = sand.u32 %s134, 1
        %s291 = smul.addr %s290, 8
        %s292 = scalar_lea.vmem [#allocation4], %s291
        // Predicated region
        $region33: #{tpu_custom_call.1} parent=31 // pred_check
          %p293 = pneg %p118
        $region34: #{tpu_custom_call.1} parent=31 // pred_check_branch
          %295 = sbr.rel (%p293) target = $region36
        $region35: #{tpu_custom_call.1} parent=31 // pred_region
          %s297 = ssub.s32 128, 128
          %298 = vsyncadd %s284, %s297
          %s299 = smul.addr %s22, 128
          %s300 = scalar_lea.hbm %s3, %s299
          %s302 = sshll.u32 %s287, 4
          %s303 = int_to_ptr.vmem [resolvable:$true] %s302
          %305 = dma.vmem_to_hbm [thread:$0]  %s303, 128, %s300, %s284
        $region36: #{tpu_custom_call.1} parent=31 // pred_fallthru
          _
        // Predicated region
        $region37: #{tpu_custom_call.1} parent=31 // pred_check
          %p306 = pneg %p144
        $region38: #{tpu_custom_call.1} parent=31 // pred_check_branch
          %308 = sbr.rel (%p306) target = $region40
        $region39: #{tpu_custom_call.1} parent=31 // pred_region
          %s310 = ssub.s32 128, 128
          %311 = vsyncadd %s289, %s310
          %s312 = smul.addr %s22, 128
          %s313 = scalar_lea.hbm %s4, %s312
          %s315 = sshll.u32 %s292, 4
          %s316 = int_to_ptr.vmem [resolvable:$true] %s315
          %318 = dma.vmem_to_hbm [thread:$0]  %s316, 128, %s313, %s289
        $region40: #{tpu_custom_call.1} parent=31 // pred_fallthru
          _
      $region32: #{tpu_custom_call.1} parent=5 // pred_fallthru
        _
      %p319 = scmp.le.s32.totalorder 2, %s17
      // Predicated region
      $region41: #{tpu_custom_call.1} parent=5 // pred_check
        %p320 = pneg %p319
      $region42: #{tpu_custom_call.1} parent=5 // pred_check_branch
        %322 = sbr.rel (%p320) target = $region44
      $region43: #{tpu_custom_call.1} parent=5 // pred_region
        %s323 = ssub.s32 %s17, 2
        // Predicated region
        $region45: #{tpu_custom_call.1} parent=43 // pred_check
          %p324 = pneg %p124
        $region46: #{tpu_custom_call.1} parent=43 // pred_check_branch
          %326 = sbr.rel (%p324) target = $region48
        $region47: #{tpu_custom_call.1} parent=43 // pred_region
          %s327 = sand.u32 %s109, 1
          %s328 = scalar_lea.sflag [#allocation3], %s327
          %s329 = sand.u32 %s109, 1
          %s330 = smul.addr %s329, 8
          %s331 = scalar_lea.vmem [#allocation2], %s330
          %332 = dma.done %s328, 128
        $region48: #{tpu_custom_call.1} parent=43 // pred_fallthru
          _
        // Predicated region
        $region49: #{tpu_custom_call.1} parent=43 // pred_check
          %p333 = pneg %p150
        $region50: #{tpu_custom_call.1} parent=43 // pred_check_branch
          %335 = sbr.rel (%p333) target = $region52
        $region51: #{tpu_custom_call.1} parent=43 // pred_region
          %s336 = sand.u32 %s135, 1
          %s337 = scalar_lea.sflag [#allocation5], %s336
          %s338 = sand.u32 %s135, 1
          %s339 = smul.addr %s338, 8
          %s340 = scalar_lea.vmem [#allocation4], %s339
          %341 = dma.done %s337, 128
        $region52: #{tpu_custom_call.1} parent=43 // pred_fallthru
          _
      $region44: #{tpu_custom_call.1} parent=5 // pred_fallthru
        _
    $region6: #{tpu_custom_call.1} parent=1 // loop_footer
      %s21 = sadd.s32 1, %s17
    $region7: #{tpu_custom_call.1} parent=1 // loop_footer_branch
      %16 = sbr.rel target = $region3
    $region8: #{tpu_custom_call.1} parent=1 // loop_exit
      _
    %342 = vsyncpa [#allocation3], 1
    %s343 = scalar_lea.sflag [#allocation3], 1
    %344 = vsyncpa %s343, 1
    %345 = vsyncpa [#allocation5], 1
    %s346 = scalar_lea.sflag [#allocation5], 1
    %347 = vsyncpa %s346, 1

</llo_original>
